<compile_context>
chip_gen: v5e
topology: v5e:2x2
jax: 0.10.0
libtpu: 0.0.40
codegen_flags: <defaults>
</compile_context>

<pallas_src>
import jax
import jax.numpy as jnp
from jax.experimental import pallas as pl
from jax.experimental.pallas import tpu as pltpu


def _constant_kernel(value_hbm_ref, out_hbm_ref, copy_sem):
    # Single whole-array HBM->HBM DMA of the constant into the output buffer.
    # No VMEM staging, no vld/vst, no per-tile pipeline overhead.
    copy = pltpu.make_async_copy(value_hbm_ref, out_hbm_ref, copy_sem)
    copy.start()
    copy.wait()


def constant_forward(value: jax.Array) -> jax.Array:
    """Pallas equivalent of Constant.forward(*args, **kwargs) -> value.

    Performance note (from review): the fastest implementation on every TPU
    generation is to simply return `value` (no kernel, no HBM traffic).  This
    function exists for the case where an explicit kernel must materialize the
    constant into a fresh output buffer; it does so with one DMA and zero VMEM
    usage, so it works unchanged for constants of any size on v5e/v6e/v7x.
    """
    return pl.pallas_call(
        _constant_kernel,
        out_shape=jax.ShapeDtypeStruct(value.shape, value.dtype),
        # Keep both operands wherever XLA placed them (HBM); no auto-DMA tiles.
        in_specs=[pl.BlockSpec(memory_space=pl.ANY)],
        out_specs=pl.BlockSpec(memory_space=pl.ANY),
        scratch_shapes=[pltpu.SemaphoreType.DMA(())],
    )(value)


class Constant:
    """Minimal JAX-side mirror of the PyTorch module."""

    def __init__(self, value: jax.Array, trainable: bool) -> None:
        # trainable vs. buffer is a training-framework distinction; forward
        # semantics are identical, so we just store the array.
        self.trainable = trainable
        self.value = jnp.asarray(value)

    def __call__(self, *args, **kwargs) -> jax.Array:
        # Production fast path would be `return self.value` (no kernel at
        # all).  We route through the single-DMA Pallas kernel to keep an
        # explicit, overhead-minimal kernel on the forward path.
        return constant_forward(self.value)


if __name__ == "__main__":
    key = jax.random.PRNGKey(0)

    # Deterministic "constant" parameter, small shape (rows=8, cols=32).
    value = jax.random.normal(key, (8, 32), dtype=jnp.float32)
    module = Constant(value, trainable=True)

    # Forward ignores its args, exactly like the PyTorch module.
    dummy_input = jnp.ones((2, 4, 16, 16), dtype=jnp.float32)
    out = module(dummy_input, some_kwarg=123)
    out = jax.block_until_ready(out)

    assert out.shape == value.shape
    assert out.dtype == value.dtype
    assert bool(jnp.allclose(out, value)), "output does not match stored constant"

    # Second check: a non-(8,128)-aligned constant, to demonstrate that the
    # DMA path has no block-shape / VMEM tiling constraints.
    value2 = jax.random.normal(jax.random.PRNGKey(0), (130, 50), dtype=jnp.float32)
    module2 = Constant(value2, trainable=False)
    out2 = jax.block_until_ready(module2())
    assert out2.shape == value2.shape
    assert out2.dtype == value2.dtype
    assert bool(jnp.allclose(out2, value2)), "output does not match stored constant"

    print("KERNEL_OK")
</pallas_src>

<mosaic_0001>
module attributes {stable_mosaic.version = 11 : i64} {
  func.func @_constant_kernel(%arg0: memref<8x32xf32, #tpu.memory_space<any>>, %arg1: memref<8x32xf32, #tpu.memory_space<any>>, %arg2: memref<!tpu.dma_semaphore, #tpu.memory_space<semaphore_mem>>) attributes {dimension_semantics = [], scalar_prefetch = 0 : i64, scratch_operands = 1 : i64, tpu.core_type = #tpu.core_type<tc>} {
    tpu.enqueue_dma source(%arg0 : memref<8x32xf32, #tpu.memory_space<any>>) target(%arg1 : memref<8x32xf32, #tpu.memory_space<any>>) target_semaphore(%arg2 : memref<!tpu.dma_semaphore, #tpu.memory_space<semaphore_mem>>)
    tpu.wait_dma2 semaphore(%arg2 : memref<!tpu.dma_semaphore, #tpu.memory_space<semaphore_mem>>) src(%arg0 : memref<8x32xf32, #tpu.memory_space<any>>) dst(%arg1 : memref<8x32xf32, #tpu.memory_space<any>>)
    return
  }
}

</mosaic_0001>

<llo_original>
// kernel: tpu_custom_call.1
$region0: #{tpu_custom_call.1}
  #allocation0 [shape = 'u32[]', space=smem, size = 0x4, offset = 0x4, fixed_abs, tag = 'smem constant byte address 0x4 - core index']
  #allocation1 [shape = 'u32[72,128]{1,0:T(1,128)}', space=vmem, size = 0x9000, scoped, tag = 'internal scratch']
  #allocation2 [shape = 's32[1]{0}', space=sflag, size = 0x4, scoped, tag = 'scratch operand']
  #allocation3 [shape = 's32[]', space=sflag, size = 0x4, offset = 0, fixed_abs, tag = 'sflag constant byte address 0x0 - dummy sync flag']
  #allocation4 [shape = 'u32[0]{0}', space=smem, size = 0, offset = 0, fixed_abs, tag = 'smem constant byte address 0x0 - null']
  %s0 = inlined_call_operand.hbm [shape: f32[8,32], index: 0, kind: input, shape index: {}]
  %s1 = inlined_call_operand.hbm [shape: f32[8,32], index: 1, kind: output, shape index: {}]
  %s2 = sld [smem:[#allocation0]]
  $region2: #{tpu_custom_call.1} parent=0
    _
  %s4 = ssub.s32 1, %s2
  %s5 = scalar_select 0, %s4, %s2
  %s7 = sshll.u32 1, 14
  %s8 = sxor.u32 4294967295, %s7
  %s10 = sshll.u32 %s0, 4
  %s11 = int_to_ptr.hbm [resolvable:$true] %s10
  %s12 = sshll.u32 %s1, 4
  %s13 = int_to_ptr.hbm [resolvable:$true] %s12
  %16 = dma.general %s11, 128, %s13, [#allocation2], [#allocation3], [#allocation4], 0, 0
  %s17 = smul.u32 8, 1
  %s18 = sshll.u32 %s17, 4
  %19 = dma.done [#allocation2], %s18
  %20 = vsyncmov [#allocation2]
  %s21 = vpop.sfrf %20
  %p22 = scmp.eq.s32.totalorder %s21, 0
  %p23 = pneg %p22
  %25 = shalt.err (%p23)

</llo_original>
